<compile_context>
chip_gen: v6e
topology: v6e:2x2x1
jax: 0.10.0
libtpu: 0.0.40
codegen_flags: <defaults>
</compile_context>

<pallas_src>
import jax
import jax.numpy as jnp
from jax.experimental import pallas as pl
from jax.experimental.pallas import tpu as pltpu


def _round_up(x: int, m: int) -> int:
    return (x + m - 1) // m * m


# Sublane packing of the second-to-last dim, by element size.
_SUBLANE_PACK = {4: 8, 2: 16, 1: 32}

# Tile caps / VMEM budgeting.  Budget is sized against v7x's 64 MiB physical
# VMEM (tightest generation); v5e/v6e have 128 MiB so the same tiles fit.
_TM_CAP = 512
_TN_CAP = 1024
_TK_CAP = 2048
_VMEM_BUDGET = 40 * 1024 * 1024
_VMEM_LIMIT_BYTES = 56 * 1024 * 1024


def _choose_nk_tiles(n: int, k: int, in_itemsize: int, out_itemsize: int):
    """Pick (tn, tk, collapse_k); tn/tk are multiples of 128.  Sized for the
    worst-case tm (=_TM_CAP) and a dropout-mask input so the choice stays
    valid for every batch size / training flag."""
    tm = _TM_CAP
    n128 = _round_up(n, 128)
    k128 = _round_up(k, 128)

    tn = min(n128, _TN_CAP)
    # Keep at least two output tiles when N allows it so both v7x TensorCores
    # get work under dimension_semantics=("parallel", "parallel", ...).
    if n128 // tn == 1 and n128 >= 256:
        tn = _round_up(n128 // 2, 128)

    def footprint(tn_, tk_, collapsed):
        b = 2 * (tm + tn_) * tk_ * in_itemsize            # dbl-buffered x, W
        b += 2 * tm * tn_ * (out_itemsize + in_itemsize)  # out + dropout mask
        b += 2 * tn_ * in_itemsize                        # bias (tiny)
        if not collapsed:
            b += tm * tn_ * 4                             # f32 accumulator
        return b

    # Collapse the K grid axis entirely when full-K tiles fit VMEM: kills the
    # per-step accumulator VMEM round-trip and the init/epilogue branches.
    if footprint(tn, k128, True) <= _VMEM_BUDGET:
        return tn, k128, True

    tk = min(k128, _TK_CAP)
    while footprint(tn, tk, False) > _VMEM_BUDGET:
        if tk > 512:
            tk = _round_up(tk // 2, 128)
        elif tn > 128:
            tn = _round_up(tn // 2, 128)
        else:
            break
    return tn, tk, False


def _make_fused_kernel(act, with_mask):
    """Single-K-step kernel: grid (M, N); no accumulator scratch."""
    def kernel(x_ref, w_ref, b_ref, *rest):
        if with_mask:
            m_ref, o_ref = rest
        else:
            m_ref, (o_ref,) = None, rest
        h = jnp.dot(x_ref[...], w_ref[...], preferred_element_type=jnp.float32)
        h = h + b_ref[...].astype(jnp.float32)
        if with_mask:
            h = h * m_ref[...].astype(jnp.float32)
        o_ref[...] = act(h).astype(o_ref.dtype)
    return kernel


def _make_split_k_kernel(act, with_mask):
    """K-split kernel: grid (M, N, K); f32 VMEM accumulator, epilogue on the
    last K step.  program_id/num_programs are read only at the kernel top
    level (never inside pl.when bodies) so this also runs under interpret."""
    def kernel(x_ref, w_ref, b_ref, *rest):
        if with_mask:
            m_ref, o_ref, acc_ref = rest
        else:
            m_ref = None
            o_ref, acc_ref = rest

        k = pl.program_id(2)
        nk = pl.num_programs(2)

        prod = jnp.dot(x_ref[...], w_ref[...],
                       preferred_element_type=jnp.float32)

        @pl.when(k == 0)
        def _():
            acc_ref[...] = prod            # first step: write, don't zero+add

        @pl.when(k > 0)
        def _():
            acc_ref[...] += prod

        @pl.when(k == nk - 1)
        def _():
            h = acc_ref[...] + b_ref[...].astype(jnp.float32)
            if with_mask:
                h = h * m_ref[...].astype(jnp.float32)
            o_ref[...] = act(h).astype(o_ref.dtype)
    return kernel


def make_euc_linear(weight, bias=None, *, dropout=0.0, act=jax.nn.relu,
                    out_dtype=None, tile_override=None):
    """Build a fused forward for torch Linear(in, out, dropout, act, use_bias).

    weight: [out_features, in_features]  (torch nn.Linear layout)
    bias:   [out_features] or None
    act:    must be ELEMENTWISE (it is applied independently per output tile).

    Parameter transpose + zero-padding happens ONCE here, not per call.
    Returns forward(x, *, training=False, rng_key=None).
    """
    if act is None:
        act = lambda v: v
    out_features, in_features = weight.shape
    in_dtype = weight.dtype
    in_itemsize = jnp.dtype(in_dtype).itemsize
    out_itemsize = (jnp.dtype(out_dtype).itemsize if out_dtype is not None
                    else in_itemsize)

    if tile_override is not None:
        tn, tk, _ = tile_override
        tn = _round_up(int(tn), 128)
        tk = _round_up(int(tk), 128)
    else:
        tn, tk, _ = _choose_nk_tiles(out_features, in_features,
                                     in_itemsize, out_itemsize)
    Np = _round_up(out_features, tn)
    Kp = _round_up(in_features, tk)

    # One-time parameter prep: W stored as [K, N] (canonical MXU RHS, no
    # per-step transposes), zero-padded to tile multiples.
    w_t = jnp.pad(jnp.transpose(weight),
                  ((0, Kp - in_features), (0, Np - out_features)))
    if bias is None:
        b_p = jnp.zeros((1, Np), dtype=in_dtype)
    else:
        b_p = jnp.pad(bias.astype(in_dtype),
                      (0, Np - out_features)).reshape(1, Np)

    dropout = float(dropout)

    def forward(x, *, training=False, rng_key=None):
        B, K = x.shape
        assert K == in_features, "in_features mismatch"
        odtype = out_dtype if out_dtype is not None else x.dtype

        sub = _SUBLANE_PACK.get(jnp.dtype(x.dtype).itemsize, 8)
        n_m_tiles = -(-B // _TM_CAP)
        tm = min(_TM_CAP, _round_up(-(-B // n_m_tiles), sub))
        Mp = _round_up(B, tm)

        x_p = x
        if Mp != B or Kp != K:
            x_p = jnp.pad(x, ((0, Mp - B), (0, Kp - K)))

        use_dropout = bool(training) and dropout > 0.0
        operands = [x_p, w_t, b_p]
        if use_dropout:
            # TODO(synk): PyTorch's dropout RNG stream is not reproducible
            # here; the keep-mask is drawn with jax.random in the wrapper and
            # applied (fused, pre-scaled) inside the kernel epilogue.
            if rng_key is None:
                rng_key = jax.random.PRNGKey(0)
            if dropout >= 1.0:
                mask = jnp.zeros((Mp, Np), dtype=x.dtype)
            else:
                keep = jax.random.bernoulli(rng_key, 1.0 - dropout, (Mp, Np))
                mask = jnp.where(keep,
                                 jnp.asarray(1.0 / (1.0 - dropout), x.dtype),
                                 jnp.asarray(0.0, x.dtype))
            operands.append(mask)

        grid_m, grid_n, grid_k = Mp // tm, Np // tn, Kp // tk

        # Advisory cost: x re-read grid_n times, W re-read grid_m times.
        cost = pl.CostEstimate(
            flops=2 * Mp * Np * Kp,
            transcendentals=0,
            bytes_accessed=(Mp * Kp * grid_n + Kp * Np * grid_m + Np)
            * in_itemsize
            + Mp * Np * jnp.dtype(odtype).itemsize
            + (Mp * Np * jnp.dtype(x.dtype).itemsize if use_dropout else 0),
        )
        out_shape = jax.ShapeDtypeStruct((Mp, Np), odtype)

        if grid_k == 1:
            kernel = _make_fused_kernel(act, use_dropout)
            in_specs = [
                pl.BlockSpec((tm, tk), lambda i, j: (i, 0)),
                pl.BlockSpec((tk, tn), lambda i, j: (0, j)),
                pl.BlockSpec((1, tn), lambda i, j: (0, j)),
            ]
            if use_dropout:
                in_specs.append(pl.BlockSpec((tm, tn), lambda i, j: (i, j)))
            grid_spec = pltpu.PrefetchScalarGridSpec(
                num_scalar_prefetch=0,
                grid=(grid_m, grid_n),
                in_specs=in_specs,
                out_specs=pl.BlockSpec((tm, tn), lambda i, j: (i, j)),
            )
            dims = ("parallel", "parallel")
        else:
            kernel = _make_split_k_kernel(act, use_dropout)
            in_specs = [
                pl.BlockSpec((tm, tk), lambda i, j, k: (i, k)),
                pl.BlockSpec((tk, tn), lambda i, j, k: (k, j)),
                pl.BlockSpec((1, tn), lambda i, j, k: (0, j)),
            ]
            if use_dropout:
                in_specs.append(pl.BlockSpec((tm, tn), lambda i, j, k: (i, j)))
            grid_spec = pltpu.PrefetchScalarGridSpec(
                num_scalar_prefetch=0,
                grid=(grid_m, grid_n, grid_k),
                in_specs=in_specs,
                out_specs=pl.BlockSpec((tm, tn), lambda i, j, k: (i, j)),
                scratch_shapes=[pltpu.VMEM((tm, tn), jnp.float32)],
            )
            dims = ("parallel", "parallel", "arbitrary")

        out = pl.pallas_call(
            kernel,
            out_shape=out_shape,
            grid_spec=grid_spec,
            compiler_params=pltpu.CompilerParams(
                dimension_semantics=dims,
                vmem_limit_bytes=_VMEM_LIMIT_BYTES,
            ),
            cost_estimate=cost,
        )(*operands)

        if Mp != B or Np != out_features:
            out = out[:B, :out_features]
        return out

    return forward


if __name__ == "__main__":
    key = jax.random.PRNGKey(0)
    k_x, k_w, k_b, k_d, k_x2, k_w2, k_b2 = jax.random.split(key, 7)

    batch, in_features, out_features = 8, 32, 32
    dropout = 0.5
    act = jax.nn.relu

    x = jax.random.normal(k_x, (batch, in_features), dtype=jnp.float32)
    # nn.Linear parameter shapes: weight [out, in], bias [out]
    weight = jax.random.normal(k_w, (out_features, in_features),
                               dtype=jnp.float32) * 0.1
    bias = jax.random.normal(k_b, (out_features,), dtype=jnp.float32) * 0.1

    fwd = make_euc_linear(weight, bias, dropout=dropout, act=act)

    # ---- eval mode: dropout is identity; must match pure-JAX reference -----
    out = jax.block_until_ready(fwd(x, training=False))
    ref = act(x @ weight.T + bias)
    assert out.shape == (batch, out_features)
    assert jnp.allclose(out, ref, atol=2e-2, rtol=2e-2), "eval mismatch"

    # ---- training mode: fused dropout; every element is 0 or 2*ref (p=0.5) -
    out_tr = jax.block_until_ready(fwd(x, training=True, rng_key=k_d))
    assert out_tr.shape == (batch, out_features)
    assert bool(jnp.all(jnp.isfinite(out_tr)))
    ok = (jnp.isclose(out_tr, 0.0, atol=1e-6)
          | jnp.isclose(out_tr, 2.0 * ref, atol=5e-2, rtol=5e-2))
    assert bool(jnp.all(ok)), "training-mode dropout mismatch"

    # ---- exercise the split-K accumulator path (grid_k > 1) ----------------
    in2, out2 = 256, 64
    x2 = jax.random.normal(k_x2, (batch, in2), dtype=jnp.float32)
    w2 = jax.random.normal(k_w2, (out2, in2), dtype=jnp.float32) * 0.05
    b2 = jax.random.normal(k_b2, (out2,), dtype=jnp.float32) * 0.1
    fwd2 = make_euc_linear(w2, b2, dropout=0.0, act=act,
                           tile_override=(128, 128, False))
    out2_v = jax.block_until_ready(fwd2(x2, training=False))
    ref2 = act(x2 @ w2.T + b2)
    assert out2_v.shape == (batch, out2)
    assert jnp.allclose(out2_v, ref2, atol=2e-2, rtol=2e-2), "split-K mismatch"

    print("KERNEL_OK")
</pallas_src>

<mosaic_0001>
module attributes {stable_mosaic.version = 11 : i64} {
  func.func @kernel(%arg0: i32, %arg1: i32, %arg2: memref<8x128xf32, #tpu.memory_space<vmem>>, %arg3: memref<128x128xf32, #tpu.memory_space<vmem>>, %arg4: memref<1x128xf32, #tpu.memory_space<vmem>>, %arg5: memref<8x128xf32, #tpu.memory_space<vmem>>) attributes {dimension_semantics = [#tpu.dimension_semantics<parallel>, #tpu.dimension_semantics<parallel>], iteration_bounds = array<i64: 1, 1>, scalar_prefetch = 0 : i64, scratch_operands = 0 : i64, tpu.core_type = #tpu.core_type<tc>, window_params = [{transform_indices = @transform_0, window_bounds = array<i64: 8, 128>}, {transform_indices = @transform_1, window_bounds = array<i64: 128, 128>}, {transform_indices = @transform_2, window_bounds = array<i64: 1, 128>}, {transform_indices = @transform_3, window_bounds = array<i64: 8, 128>}]} {
    %c0 = arith.constant 0 : index
    %c0_0 = arith.constant 0 : index
    %0 = vector.load %arg2[%c0, %c0_0] : memref<8x128xf32, #tpu.memory_space<vmem>>, vector<8x128xf32>
    %c0_1 = arith.constant 0 : index
    %c0_2 = arith.constant 0 : index
    %1 = vector.load %arg3[%c0_1, %c0_2] : memref<128x128xf32, #tpu.memory_space<vmem>>, vector<128x128xf32>
    %cst = arith.constant dense<0.000000e+00> : vector<8x128xf32>
    %2 = tpu.matmul %0, %1, %cst {dimension_numbers = #tpu.dot_dimension_numbers<[1], [0], [0], [1], [0, 0, 1, 1], [], []>} : vector<8x128xf32>, vector<128x128xf32>, vector<8x128xf32> -> vector<8x128xf32>
    %c0_3 = arith.constant 0 : index
    %c0_4 = arith.constant 0 : index
    %3 = vector.load %arg4[%c0_3, %c0_4] : memref<1x128xf32, #tpu.memory_space<vmem>>, vector<1x128xf32>
    %4 = vector.broadcast %3 : vector<1x128xf32> to vector<8x128xf32>
    %5 = arith.addf %2, %4 : vector<8x128xf32>
    %cst_5 = arith.constant 0.000000e+00 : f32
    %6 = vector.broadcast %cst_5 : f32 to vector<8x128xf32>
    %7 = arith.maximumf %5, %6 : vector<8x128xf32>
    %c0_6 = arith.constant 0 : index
    %c0_7 = arith.constant 0 : index
    %8 = vector.load %arg5[%c0_6, %c0_7] : memref<8x128xf32, #tpu.memory_space<vmem>>, vector<8x128xf32>
    tpu.vector_store %arg5[%c0_6, %c0_7], %7 {strides = array<i32>} : memref<8x128xf32, #tpu.memory_space<vmem>>, vector<8x128xf32>,
    return
  }
  func.func @transform_0(%arg0: i32, %arg1: i32) -> (i32, i32) {
    %c0_i32 = arith.constant 0 : i32
    %c0_i32_0 = arith.constant 0 : i32
    return %arg0, %c0_i32 : i32, i32
  }
  func.func @transform_1(%arg0: i32, %arg1: i32) -> (i32, i32) {
    %c0_i32 = arith.constant 0 : i32
    %c0_i32_0 = arith.constant 0 : i32
    return %c0_i32, %arg1 : i32, i32
  }
  func.func @transform_2(%arg0: i32, %arg1: i32) -> (i32, i32) {
    %c0_i32 = arith.constant 0 : i32
    %c0_i32_0 = arith.constant 0 : i32
    return %c0_i32, %arg1 : i32, i32
  }
  func.func @transform_3(%arg0: i32, %arg1: i32) -> (i32, i32) {
    %c0_i32 = arith.constant 0 : i32
    return %arg0, %arg1 : i32, i32
  }
}

</mosaic_0001>

<llo_original>
// kernel: tpu_custom_call.1
$region0: #{tpu_custom_call.1}
  #allocation0 [shape = 'u32[]', space=smem, size = 0x4, offset = 0x4, fixed_abs, tag = 'smem constant byte address 0x4 - core index']
  #allocation1 [shape = 'u32[144,128]{1,0:T(1,128)}', space=vmem, size = 0x12000, scoped, tag = 'internal scratch']
  %s0 = inlined_call_operand.hbm [shape: f32[8,128], index: 0, kind: input, shape index: {}]
  %s1 = inlined_call_operand.hbm [shape: f32[128,128], index: 1, kind: input, shape index: {}]
  %s2 = inlined_call_operand.vmem [shape: f32[1,128], index: 2, kind: input, shape index: {}]
  %s3 = inlined_call_operand.hbm [shape: f32[8,128], index: 3, kind: output, shape index: {}]
  %s4 = sld [smem:[#allocation0]]
  $region30: #{tpu_custom_call.1} parent=0
    _
  %s6 = ssub.s32 1, %s4
  %s7 = scalar_select 0, %s6, %s4
  $region1: #{tpu_custom_call.1} parent=0
    #allocation2 [shape = 'u8[4096]{0}', space=vmem, size = 0x1000, scoped, tag = 'input window, operand 0, single buffered']
    #allocation3 [shape = 's32[1]{0}', space=sflag, size = 0x4, scoped, tag = 'scoped memory for tpu_custom_call.1']
    #allocation4 [shape = 's32[1]{0}', space=sflag, size = 0x4, scoped, tag = 'scoped memory for tpu_custom_call.1']
    #allocation5 [shape = 'u8[65536]{0}', space=vmem, size = 0x10000, scoped, tag = 'input window, operand 1, single buffered']
    #allocation6 [shape = 's32[1]{0}', space=sflag, size = 0x4, scoped, tag = 'scoped memory for tpu_custom_call.1']
    #allocation7 [shape = 'u8[4096]{0}', space=vmem, size = 0x1000, scoped, tag = 'output window, operand 0, single buffered']
    %8 = vsyncpa [#allocation3], 0
    %9 = vsyncpa [#allocation6], 0
    %10 = vsyncpa [#allocation4], 0
    // Predicated region
    $region2: #{tpu_custom_call.1} parent=1 // pred_check
      _
    $region3: #{tpu_custom_call.1} parent=1 // pred_check_branch
      %12 = sbr.rel (0) target = $region5
    $region4: #{tpu_custom_call.1} parent=1 // pred_region
      %s14 = ssub.s32 128, 128
      %15 = vsyncadd [#allocation3], %s14
      %s17 = sshll.u32 [#allocation2], 4
      %s18 = int_to_ptr.vmem [resolvable:$true] %s17
      %20 = dma.hbm_to_vmem [thread:$0]  %s0, 128, %s18, [#allocation3]
    $region5: #{tpu_custom_call.1} parent=1 // pred_fallthru
      _
    // Predicated region
    $region6: #{tpu_custom_call.1} parent=1 // pred_check
      _
    $region7: #{tpu_custom_call.1} parent=1 // pred_check_branch
      %22 = sbr.rel (0) target = $region9
    $region8: #{tpu_custom_call.1} parent=1 // pred_region
      %s24 = ssub.s32 2048, 2048
      %25 = vsyncadd [#allocation6], %s24
      %s26 = sshll.u32 [#allocation5], 4
      %s27 = int_to_ptr.vmem [resolvable:$true] %s26
      %32 = dma.hbm_to_vmem [thread:$0]  %s1, 2048, %s27, [#allocation6], 128, 128, 8
    $region9: #{tpu_custom_call.1} parent=1 // pred_fallthru
      _
    // Predicated region
    $region10: #{tpu_custom_call.1} parent=1 // pred_check
      _
    $region11: #{tpu_custom_call.1} parent=1 // pred_check_branch
      %34 = sbr.rel (0) target = $region13
    $region12: #{tpu_custom_call.1} parent=1 // pred_region
      _
    $region13: #{tpu_custom_call.1} parent=1 // pred_fallthru
      _
    // Predicated region
    $region14: #{tpu_custom_call.1} parent=1 // pred_check
      _
    $region15: #{tpu_custom_call.1} parent=1 // pred_check_branch
      %36 = sbr.rel (0) target = $region17
    $region16: #{tpu_custom_call.1} parent=1 // pred_region
      %37 = dma.done [#allocation3], 128
    $region17: #{tpu_custom_call.1} parent=1 // pred_fallthru
      _
    // Predicated region
    $region18: #{tpu_custom_call.1} parent=1 // pred_check
      _
    $region19: #{tpu_custom_call.1} parent=1 // pred_check_branch
      %39 = sbr.rel (0) target = $region21
    $region20: #{tpu_custom_call.1} parent=1 // pred_region
      %40 = dma.done [#allocation6], 2048
    $region21: #{tpu_custom_call.1} parent=1 // pred_fallthru
      _
    %v41 = vld [vmem:[#allocation2] sm:$0xff]
    %v42 = vld [vmem:[#allocation5] sm:$0xff]
    %v43 = vld [vmem:[#allocation5 + $0x8] sm:$0xff]
    %v44 = vld [vmem:[#allocation5 + $0x10] sm:$0xff]
    %v45 = vld [vmem:[#allocation5 + $0x18] sm:$0xff]
    %v46 = vld [vmem:[#allocation5 + $0x20] sm:$0xff]
    %v47 = vld [vmem:[#allocation5 + $0x28] sm:$0xff]
    %v48 = vld [vmem:[#allocation5 + $0x30] sm:$0xff]
    %v49 = vld [vmem:[#allocation5 + $0x38] sm:$0xff]
    %v50 = vld [vmem:[#allocation5 + $0x40] sm:$0xff]
    %v51 = vld [vmem:[#allocation5 + $0x48] sm:$0xff]
    %v52 = vld [vmem:[#allocation5 + $0x50] sm:$0xff]
    %v53 = vld [vmem:[#allocation5 + $0x58] sm:$0xff]
    %v54 = vld [vmem:[#allocation5 + $0x60] sm:$0xff]
    %v55 = vld [vmem:[#allocation5 + $0x68] sm:$0xff]
    %v56 = vld [vmem:[#allocation5 + $0x70] sm:$0xff]
    %v57 = vld [vmem:[#allocation5 + $0x78] sm:$0xff]
    %v58 = vld [vmem:[%s2] sm:$0x1]
    %v60 = vlaneseq
    %v61 = vshrl.u32 %v60, 7
    %v62 = vsub.s32 0, %v61
    %v63 = vrot.slane %v58, %v62
    %65 = vmatprep.subr.mxu0 0.0
    %66 = vmatpush1.msra.mxu0 %v57
    %67 = vmatprep.subr.mxu0 0.0
    %68 = vmatpush1.msra.mxu0 %v56
    %69 = vmatprep.subr.mxu0 0.0
    %70 = vmatpush1.msra.mxu0 %v55
    %71 = vmatprep.subr.mxu0 0.0
    %72 = vmatpush1.msra.mxu0 %v54
    %73 = vmatprep.subr.mxu0 0.0
    %74 = vmatpush1.msra.mxu0 %v53
    %75 = vmatprep.subr.mxu0 0.0
    %76 = vmatpush1.msra.mxu0 %v52
    %77 = vmatprep.subr.mxu0 0.0
    %78 = vmatpush1.msra.mxu0 %v51
    %79 = vmatprep.subr.mxu0 0.0
    %80 = vmatpush1.msra.mxu0 %v50
    %81 = vmatprep.subr.mxu0 0.0
    %82 = vmatpush1.msra.mxu0 %v49
    %83 = vmatprep.subr.mxu0 0.0
    %84 = vmatpush1.msra.mxu0 %v48
    %85 = vmatprep.subr.mxu0 0.0
    %86 = vmatpush1.msra.mxu0 %v47
    %87 = vmatprep.subr.mxu0 0.0
    %88 = vmatpush1.msra.mxu0 %v46
    %89 = vmatprep.subr.mxu0 0.0
    %90 = vmatpush1.msra.mxu0 %v45
    %91 = vmatprep.subr.mxu0 0.0
    %92 = vmatpush1.msra.mxu0 %v44
    %93 = vmatprep.subr.mxu0 0.0
    %94 = vmatpush1.msra.mxu0 %v43
    %95 = vmatprep.subr.mxu0 0.0
    %96 = vmatpush1.msra.mxu0 %v42
    %97 = vmatprep.subr.mxu0 0.0
    %98 = vmatpush2.msra.mxu0 0.0
    %99 = vmatprep.subr.mxu0 0.0
    %100 = vmatpush2.msra.mxu0 0.0
    %101 = vmatprep.subr.mxu0 0.0
    %102 = vmatpush2.msra.mxu0 0.0
    %103 = vmatprep.subr.mxu0 0.0
    %104 = vmatpush2.msra.mxu0 0.0
    %105 = vmatprep.subr.mxu0 0.0
    %106 = vmatpush2.msra.mxu0 0.0
    %107 = vmatprep.subr.mxu0 0.0
    %108 = vmatpush2.msra.mxu0 0.0
    %109 = vmatprep.subr.mxu0 0.0
    %110 = vmatpush2.msra.mxu0 0.0
    %111 = vmatprep.subr.mxu0 0.0
    %112 = vmatpush2.msra.mxu0 0.0
    %113 = vmatprep.subr.mxu0 0.0
    %114 = vmatpush2.msra.mxu0 0.0
    %115 = vmatprep.subr.mxu0 0.0
    %116 = vmatpush2.msra.mxu0 0.0
    %117 = vmatprep.subr.mxu0 0.0
    %118 = vmatpush2.msra.mxu0 0.0
    %119 = vmatprep.subr.mxu0 0.0
    %120 = vmatpush2.msra.mxu0 0.0
    %121 = vmatprep.subr.mxu0 0.0
    %122 = vmatpush2.msra.mxu0 0.0
    %123 = vmatprep.subr.mxu0 0.0
    %124 = vmatpush2.msra.mxu0 0.0
    %125 = vmatprep.subr.mxu0 0.0
    %126 = vmatpush2.msra.mxu0 0.0
    %127 = vmatprep.subr.mxu0 0.0
    %128 = vmatpush2.msra.mxu0 0.0
    %129 = vmatprep.mubr.f32.mxu0 0.0
    %130 = vmatmul.mubr.f32.gmra.mxu0 %v41
    %v131 = vpop.f32.mrf.mxu0
    %v132 = vadd.f32 %v63, %v131
    %v133 = vpop.f32.mrf.mxu0
    %134 = vdwg.mxu0
    %v135 = vmax.f32 %v132, 0.0
    %136 = vst [vmem:[#allocation7] sm:$0xff] %v135
    // Predicated region
    $region22: #{tpu_custom_call.1} parent=1 // pred_check
      _
    $region23: #{tpu_custom_call.1} parent=1 // pred_check_branch
      %138 = sbr.rel (0) target = $region25
    $region24: #{tpu_custom_call.1} parent=1 // pred_region
      %s140 = ssub.s32 128, 128
      %141 = vsyncadd [#allocation4], %s140
      %s143 = sshll.u32 [#allocation7], 4
      %s144 = int_to_ptr.vmem [resolvable:$true] %s143
      %146 = dma.vmem_to_hbm [thread:$0]  %s144, 128, %s3, [#allocation4]
    $region25: #{tpu_custom_call.1} parent=1 // pred_fallthru
      _
    // Predicated region
    $region26: #{tpu_custom_call.1} parent=1 // pred_check
      _
    $region27: #{tpu_custom_call.1} parent=1 // pred_check_branch
      %148 = sbr.rel (0) target = $region29
    $region28: #{tpu_custom_call.1} parent=1 // pred_region
      %149 = dma.done [#allocation4], 128
    $region29: #{tpu_custom_call.1} parent=1 // pred_fallthru
      _
    %150 = vsyncpa [#allocation3], 1
    %151 = vsyncpa [#allocation6], 1
    %152 = vsyncpa [#allocation4], 1

</llo_original>
